<compile_context>
chip_gen: v7x
topology: tpu7x:2x2x1
jax: 0.10.0
libtpu: 0.0.40
codegen_flags: <defaults>
</compile_context>

<pallas_src>
import math

import jax
import jax.numpy as jnp
import numpy as np
from jax.experimental import pallas as pl
from jax.experimental.pallas import tpu as pltpu


# ----------------------------- Pallas kernel ------------------------------ #

def _add_pos_kernel(f0_ref, f1_ref, pos_ref, o0_ref, o1_ref):
    """All refs are (1, C, T) lane-dense blocks.  Pure VPU adds."""
    pos = pos_ref[...]
    o0_ref[...] = f0_ref[...] + pos
    o1_ref[...] = f1_ref[...] + pos


_TARGET_BLOCK_BYTES = 2 << 20   # ~2 MiB/block: good across v5e / v6e / v7x


def _pick_lane_tile(period, hw, c, itemsize, target_bytes=_TARGET_BLOCK_BYTES):
    """Choose the lane tile T for the flattened H*W axis.

    Returns (T, pos_is_periodic):
      * pos_is_periodic=True  -> T is a multiple of 128 that divides `period`
        (= hs*W), so pos can stay at its one-period size and be indexed with
        t % (period // T).  (T then also divides HW = s*period: no ragged block.)
      * pos_is_periodic=False -> near-target tile with a ragged last block
        (grid uses pl.cdiv); wrapper materializes the full-size pos.
    """
    max_t = max(128, (target_bytes // max(c * itemsize, 1)) // 128 * 128)
    ragged_t = min(max_t, pl.cdiv(hw, 128) * 128)
    if ragged_t >= hw:
        ragged_t = hw            # single full-extent block (always a legal shape)

    if period % 128 == 0:
        best = 128
        t = 256
        while t <= min(period, max_t):
            if period % t == 0:
                best = t
            t += 128
        # Prefer the divisor tile (pos stays one-period, no extra HBM traffic)
        # unless a ragged tile would give >=4x larger blocks (e.g. 128*prime).
        if ragged_t < 4 * best:
            return best, True
    # TODO(synk): for extremely large C (C*128*itemsize >> target) also tile
    # over C; typical unimatch feature_channels (96-256) never hit this.
    return ragged_t, False


def _add_position_pallas(f0, f1, pos, lane_tile, pos_periodic):
    """f0/f1: [B, C, HW]; pos: [1, C, P] (P == HW or one period).  f + pos."""
    B, C, HW = f0.shape
    P = pos.shape[-1]
    T = lane_tile
    n_t = pl.cdiv(HW, T)
    n_per = max(P // T, 1)

    feat_spec = pl.BlockSpec((1, C, T), lambda t, b: (b, 0, t))
    if pos_periodic:
        # pos holds one spatial period; its block index repeats with period n_per
        # and is constant across the (innermost) batch axis -> DMA'd rarely.
        pos_spec = pl.BlockSpec((1, C, T), lambda t, b: (0, 0, t % n_per))
    else:
        pos_spec = pl.BlockSpec((1, C, T), lambda t, b: (0, 0, t))

    block_bytes = C * T * jnp.dtype(f0.dtype).itemsize
    # 5 streams (f0, f1, pos, o0, o1) double-buffered + headroom.
    vmem_limit = max(48 << 20, 12 * block_bytes)

    return pl.pallas_call(
        _add_pos_kernel,
        out_shape=(
            jax.ShapeDtypeStruct((B, C, HW), f0.dtype),
            jax.ShapeDtypeStruct((B, C, HW), f1.dtype),
        ),
        grid_spec=pltpu.PrefetchScalarGridSpec(
            num_scalar_prefetch=0,
            grid=(n_t, B),                      # batch innermost -> pos reuse
            in_specs=[feat_spec, feat_spec, pos_spec],
            out_specs=[feat_spec, feat_spec],
        ),
        compiler_params=pltpu.CompilerParams(
            dimension_semantics=("parallel", "arbitrary"),
            vmem_limit_bytes=vmem_limit,
        ),
    )(f0, f1, pos)


# --------------------- position embedding (wrapper JAX) -------------------- #

def _position_embedding_sine(h, w, c):
    """Exact PositionEmbeddingSine(normalize=True, scale=2*pi) -> [c, h, w] f32."""
    npf = c // 2
    scale = 2.0 * math.pi
    eps = 1e-6
    temperature = 10000.0

    y_embed = (jnp.arange(h, dtype=jnp.float32) + 1.0) / (h + eps) * scale   # [h]
    x_embed = (jnp.arange(w, dtype=jnp.float32) + 1.0) / (w + eps) * scale   # [w]

    k = jnp.arange(npf, dtype=jnp.float32)
    dim_t = temperature ** (2.0 * jnp.floor(k / 2.0) / npf)                  # [npf]
    even = (jnp.arange(npf) % 2) == 0                                        # [npf]

    pos_y = y_embed[:, None, None] / dim_t                                   # [h,1,npf]
    pos_x = x_embed[None, :, None] / dim_t                                   # [1,w,npf]
    pos_y = jnp.where(even, jnp.sin(pos_y), jnp.cos(pos_y))
    pos_x = jnp.where(even, jnp.sin(pos_x), jnp.cos(pos_x))
    pos_y = jnp.broadcast_to(pos_y, (h, w, npf))
    pos_x = jnp.broadcast_to(pos_x, (h, w, npf))

    pos = jnp.concatenate([pos_y, pos_x], axis=-1)                           # [h,w,c]
    return jnp.transpose(pos, (2, 0, 1))                                     # [c,h,w]


def feature_add_position(feature0, feature1, attn_splits, feature_channels):
    """Inputs/outputs NCHW [B, C, H, W], matching the PyTorch module's forward."""
    B, C, H, W = feature0.shape
    assert C == feature_channels

    s = attn_splits if attn_splits > 1 else 1
    assert H % s == 0 and W % s == 0
    hs, ws = H // s, W // s
    HW = H * W
    P = hs * W                               # pos period along flattened H*W
    itemsize = jnp.dtype(feature0.dtype).itemsize

    T, periodic = _pick_lane_tile(P, HW, C, itemsize)

    # Position embedding on the split spatial size.  split -> add -> merge is
    # equivalent to adding pos tiled with spatial period (hs, ws), i.e. with
    # period P = hs*W along the flattened H*W axis.
    pos = _position_embedding_sine(hs, ws, C)                    # [C, hs, ws] f32
    if periodic:
        if s > 1:
            pos = jnp.tile(pos, (1, 1, s))                       # [C, hs, W] = one period
        pos = pos.astype(feature0.dtype).reshape(1, C, P)
    else:
        if s > 1:
            pos = jnp.tile(pos, (1, s, s))                       # [C, H, W] (fallback)
        pos = pos.astype(feature0.dtype).reshape(1, C, HW)

    f0 = feature0.reshape(B, C, HW)          # contiguous reshape, no copy
    f1 = feature1.reshape(B, C, HW)
    o0, o1 = _add_position_pallas(f0, f1, pos, T, periodic)
    return o0.reshape(B, C, H, W), o1.reshape(B, C, H, W)


# ---------------------- independent numpy reference ------------------------ #

def _ref_pos_np(h, w, c):
    npf = c // 2
    scale = 2.0 * math.pi
    eps = 1e-6
    y_embed = np.broadcast_to(np.arange(1, h + 1, dtype=np.float32)[:, None], (h, w))
    x_embed = np.broadcast_to(np.arange(1, w + 1, dtype=np.float32)[None, :], (h, w))
    y_embed = y_embed / (h + eps) * scale
    x_embed = x_embed / (w + eps) * scale
    dim_t = np.arange(npf, dtype=np.float32)
    dim_t = 10000.0 ** (2.0 * np.floor(dim_t / 2.0) / npf)
    pos_y = y_embed[:, :, None] / dim_t
    pos_x = x_embed[:, :, None] / dim_t
    pos_y = np.stack([np.sin(pos_y[:, :, 0::2]), np.cos(pos_y[:, :, 1::2])], axis=3).reshape(h, w, npf)
    pos_x = np.stack([np.sin(pos_x[:, :, 0::2]), np.cos(pos_x[:, :, 1::2])], axis=3).reshape(h, w, npf)
    pos = np.concatenate([pos_y, pos_x], axis=2)
    return np.transpose(pos, (2, 0, 1))                          # [c, h, w]


def _ref_split(x, s):
    b, c, h, w = x.shape
    return (x.reshape(b, c, s, h // s, s, w // s)
             .transpose(0, 2, 4, 1, 3, 5)
             .reshape(b * s * s, c, h // s, w // s))


def _ref_merge(x, s):
    b, c, h, w = x.shape
    nb = b // s // s
    return (x.reshape(nb, s, s, c, h, w)
             .transpose(0, 3, 1, 4, 2, 5)
             .reshape(nb, c, s * h, s * w))


def _feature_add_position_ref(feature0, feature1, attn_splits, feature_channels):
    f0 = np.asarray(feature0)
    f1 = np.asarray(feature1)
    if attn_splits > 1:
        f0s = _ref_split(f0, attn_splits)
        f1s = _ref_split(f1, attn_splits)
        pos = _ref_pos_np(f0s.shape[2], f0s.shape[3], feature_channels)[None]
        return _ref_merge(f0s + pos, attn_splits), _ref_merge(f1s + pos, attn_splits)
    pos = _ref_pos_np(f0.shape[2], f0.shape[3], feature_channels)[None]
    return f0 + pos, f1 + pos


def _check(B, C, H, W, splits, key):
    k0, k1 = jax.random.split(key)
    feature0 = jax.random.normal(k0, (B, C, H, W), dtype=jnp.float32)
    feature1 = jax.random.normal(k1, (B, C, H, W), dtype=jnp.float32)
    out0, out1 = feature_add_position(feature0, feature1, splits, C)
    jax.block_until_ready((out0, out1))
    ref0, ref1 = _feature_add_position_ref(feature0, feature1, splits, C)
    np.testing.assert_allclose(np.asarray(out0), ref0, atol=1e-4, rtol=1e-4)
    np.testing.assert_allclose(np.asarray(out1), ref1, atol=1e-4, rtol=1e-4)


# --------------------------------- main ------------------------------------ #

if __name__ == "__main__":
    key = jax.random.PRNGKey(0)
    k_a, k_b, k_c = jax.random.split(key, 3)

    # attn_splits > 1, 128-aligned spatial (periodic-pos path)
    _check(2, 32, 16, 16, 2, k_a)
    # attn_splits == 1 (periodic-pos path, single tile)
    _check(2, 32, 16, 16, 1, k_b)
    # non-128-aligned spatial (ragged / full-pos fallback path)
    _check(2, 32, 20, 12, 2, k_c)

    print("KERNEL_OK")
</pallas_src>

<mosaic_0001>
module attributes {stable_mosaic.version = 11 : i64} {
  func.func @_add_pos_kernel(%arg0: i32, %arg1: i32, %arg2: memref<1x32x128xf32, #tpu.memory_space<vmem>>, %arg3: memref<1x32x128xf32, #tpu.memory_space<vmem>>, %arg4: memref<1x32x128xf32, #tpu.memory_space<vmem>>, %arg5: memref<1x32x128xf32, #tpu.memory_space<vmem>>, %arg6: memref<1x32x128xf32, #tpu.memory_space<vmem>>) attributes {dimension_semantics = [#tpu.dimension_semantics<parallel>, #tpu.dimension_semantics<arbitrary>], iteration_bounds = array<i64: 2, 2>, scalar_prefetch = 0 : i64, scratch_operands = 0 : i64, tpu.core_type = #tpu.core_type<tc>, window_params = [{transform_indices = @transform_0, window_bounds = array<i64: 1, 32, 128>}, {transform_indices = @transform_1, window_bounds = array<i64: 1, 32, 128>}, {transform_indices = @transform_2, window_bounds = array<i64: 1, 32, 128>}, {transform_indices = @transform_3, window_bounds = array<i64: 1, 32, 128>}, {transform_indices = @transform_4, window_bounds = array<i64: 1, 32, 128>}]} {
    %c0 = arith.constant 0 : index
    %c0_0 = arith.constant 0 : index
    %c0_1 = arith.constant 0 : index
    %0 = vector.load %arg4[%c0, %c0_0, %c0_1] : memref<1x32x128xf32, #tpu.memory_space<vmem>>, vector<1x32x128xf32>
    %c0_2 = arith.constant 0 : index
    %c0_3 = arith.constant 0 : index
    %c0_4 = arith.constant 0 : index
    %1 = vector.load %arg2[%c0_2, %c0_3, %c0_4] : memref<1x32x128xf32, #tpu.memory_space<vmem>>, vector<1x32x128xf32>
    %2 = arith.addf %1, %0 : vector<1x32x128xf32>
    %c0_5 = arith.constant 0 : index
    %c0_6 = arith.constant 0 : index
    %c0_7 = arith.constant 0 : index
    %3 = vector.load %arg5[%c0_5, %c0_6, %c0_7] : memref<1x32x128xf32, #tpu.memory_space<vmem>>, vector<1x32x128xf32>
    tpu.vector_store %arg5[%c0_5, %c0_6, %c0_7], %2 {strides = array<i32>} : memref<1x32x128xf32, #tpu.memory_space<vmem>>, vector<1x32x128xf32>,
    %c0_8 = arith.constant 0 : index
    %c0_9 = arith.constant 0 : index
    %c0_10 = arith.constant 0 : index
    %4 = vector.load %arg3[%c0_8, %c0_9, %c0_10] : memref<1x32x128xf32, #tpu.memory_space<vmem>>, vector<1x32x128xf32>
    %5 = arith.addf %4, %0 : vector<1x32x128xf32>
    %c0_11 = arith.constant 0 : index
    %c0_12 = arith.constant 0 : index
    %c0_13 = arith.constant 0 : index
    %6 = vector.load %arg6[%c0_11, %c0_12, %c0_13] : memref<1x32x128xf32, #tpu.memory_space<vmem>>, vector<1x32x128xf32>
    tpu.vector_store %arg6[%c0_11, %c0_12, %c0_13], %5 {strides = array<i32>} : memref<1x32x128xf32, #tpu.memory_space<vmem>>, vector<1x32x128xf32>,
    return
  }
  func.func @transform_0(%arg0: i32, %arg1: i32) -> (i32, i32, i32) {
    %c0_i32 = arith.constant 0 : i32
    %c0_i32_0 = arith.constant 0 : i32
    return %arg1, %c0_i32, %arg0 : i32, i32, i32
  }
  func.func @transform_1(%arg0: i32, %arg1: i32) -> (i32, i32, i32) {
    %c0_i32 = arith.constant 0 : i32
    %c0_i32_0 = arith.constant 0 : i32
    return %arg1, %c0_i32, %arg0 : i32, i32, i32
  }
  func.func @transform_2(%arg0: i32, %arg1: i32) -> (i32, i32, i32) {
    %c1_i32 = arith.constant 1 : i32
    %c0_i32 = arith.constant 0 : i32
    %0 = arith.cmpi eq, %c1_i32, %c0_i32 : i32
    %c1_i32_0 = arith.constant 1 : i32
    %1 = arith.select %0, %c1_i32_0, %c1_i32 : i32
    %2 = arith.remsi %arg0, %1 : i32
    %c0_i32_1 = arith.constant 0 : i32
    %3 = arith.cmpi ne, %2, %c0_i32_1 : i32
    %c0_i32_2 = arith.constant 0 : i32
    %4 = arith.cmpi slt, %2, %c0_i32_2 : i32
    %c0_i32_3 = arith.constant 0 : i32
    %5 = arith.cmpi slt, %1, %c0_i32_3 : i32
    %6 = arith.xori %4, %5 : i1
    %7 = arith.andi %6, %3 : i1
    %8 = arith.addi %2, %1 : i32
    %9 = arith.select %7, %8, %2 : i32
    %c0_i32_4 = arith.constant 0 : i32
    %c0_i32_5 = arith.constant 0 : i32
    %c0_i32_6 = arith.constant 0 : i32
    return %c0_i32_4, %c0_i32_5, %9 : i32, i32, i32
  }
  func.func @transform_3(%arg0: i32, %arg1: i32) -> (i32, i32, i32) {
    %c0_i32 = arith.constant 0 : i32
    %c0_i32_0 = arith.constant 0 : i32
    return %arg1, %c0_i32, %arg0 : i32, i32, i32
  }
  func.func @transform_4(%arg0: i32, %arg1: i32) -> (i32, i32, i32) {
    %c0_i32 = arith.constant 0 : i32
    %c0_i32_0 = arith.constant 0 : i32
    return %arg1, %c0_i32, %arg0 : i32, i32, i32
  }
}

</mosaic_0001>

<llo_original>
// kernel: tpu_custom_call.1
$region0: #{tpu_custom_call.1}
  #allocation0 [shape = 'u32[]', space=smem, size = 0x4, offset = 0x4, fixed_abs, tag = 'smem constant byte address 0x4 - core index']
  #allocation1 [shape = 'u32[144,128]{1,0:T(1,128)}', space=vmem, size = 0x12000, scoped, tag = 'internal scratch']
  %s0 = inlined_call_operand.hbm [shape: f32[2,32,256], index: 0, kind: input, shape index: {}]
  %s1 = inlined_call_operand.hbm [shape: f32[2,32,256], index: 1, kind: input, shape index: {}]
  %s2 = inlined_call_operand.hbm [shape: f32[1,32,128], index: 2, kind: input, shape index: {}]
  %s3 = inlined_call_operand.hbm [shape: f32[2,32,256], index: 3, kind: output, shape index: {0}]
  %s4 = inlined_call_operand.hbm [shape: f32[2,32,256], index: 4, kind: output, shape index: {1}]
  %5 = xla_tuple %s3, %s4
  %s6 = sld [smem:[#allocation0]]
  $region65: #{tpu_custom_call.1} parent=0
    _
  %s8 = ssub.s32 1, %s6
  %s9 = scalar_select 0, %s8, %s6
  $region1: #{tpu_custom_call.1} parent=0
    #allocation2 [shape = 'u8[32768]{0}', space=vmem, size = 0x8000, scoped, tag = 'input window, operand 0']
    #allocation3 [shape = 's32[2]{0}', space=sflag, size = 0x8, scoped, tag = 'scoped memory for tpu_custom_call.1']
    #allocation4 [shape = 's32[2]{0}', space=sflag, size = 0x8, scoped, tag = 'scoped memory for tpu_custom_call.1']
    #allocation5 [shape = 'u8[32768]{0}', space=vmem, size = 0x8000, scoped, tag = 'input window, operand 1']
    #allocation6 [shape = 's32[2]{0}', space=sflag, size = 0x8, scoped, tag = 'scoped memory for tpu_custom_call.1']
    #allocation7 [shape = 'u8[16384]{0}', space=vmem, size = 0x4000, scoped, tag = 'input window, operand 2, single buffered']
    #allocation8 [shape = 'u8[32768]{0}', space=vmem, size = 0x8000, scoped, tag = 'output window, operand 0']
    #allocation9 [shape = 'u8[32768]{0}', space=vmem, size = 0x8000, scoped, tag = 'output window, operand 1']
    #allocation10 [shape = 's32[2]{0}', space=sflag, size = 0x8, scoped, tag = 'scoped memory for tpu_custom_call.1']
    %10 = vsyncpa [#allocation3], 0
    %s11 = scalar_lea.sflag [#allocation3], 1
    %12 = vsyncpa %s11, 0
    %13 = vsyncpa [#allocation6], 0
    %s14 = scalar_lea.sflag [#allocation6], 1
    %15 = vsyncpa %s14, 0
    %16 = vsyncpa [#allocation4], 0
    %s17 = scalar_lea.sflag [#allocation4], 1
    %18 = vsyncpa %s17, 0
    %19 = vsyncpa [#allocation10], 0
    %s20 = scalar_lea.sflag [#allocation10], 1
    %21 = vsyncpa %s20, 0
    loop: start=0, step=1, limit=6
    $region2: #{tpu_custom_call.1} parent=1 // loop_pre_header
      _
    $region3: #{tpu_custom_call.1} parent=1 // loop_header
      %s23 = sphi 0, %s27
      %p24 = scmp.ge.s32.totalorder %s23, 6
      %s30 = sphi 0, %s42
      %s31 = sphi 0, %s38
      %s32 = sphi 0, %s30
      %s33 = sphi 0, %s31
      %s34 = sphi 0, %s32
      %s35 = sphi 0, %s33
      %s47 = sphi 0, %s49
      %s50 = sphi 0, %s47
      %s51 = sphi 0, %s50
      %s67 = sphi 0, %s51
      %s75 = sphi 0, %s77
      %s78 = sphi 0, %s75
      %s79 = sphi 0, %s78
      %s95 = sphi 0, %s79
      %s99 = sphi 0, %s99
      %s101 = sphi 0, %s99
      %s102 = sphi 0, %s101
      %s116 = sphi 0, %s102
      %s124 = sphi 0, %s126
      %s127 = sphi 0, %s124
      %s128 = sphi 0, %s127
      %s144 = sphi 0, %s128
      %s152 = sphi 0, %s154
      %s155 = sphi 0, %s152
      %s156 = sphi 0, %s155
      %s172 = sphi 0, %s156
    $region4: #{tpu_custom_call.1} parent=1 // loop_header_branch
      %26 = sbr.rel (%p24) target = $region8
    $region5: #{tpu_custom_call.1} parent=1 // loop_body
      %s28 = ssub.s32 %s23, 1
      %s29 = ssub.s32 %s23, 2
      %s36 = sadd.s32 1, %s31
      %p37 = scmp.ge.s32.totalorder %s36, 2
      %s38 = scalar_select %p37, 0, %s36
      %s39 = sadd.s32 1, %s30
      %s40 = scalar_select %p37, %s39, %s30
      %p41 = scmp.ge.s32.totalorder %s40, 2
      %s42 = scalar_select %p41, 0, %s40
      %s43 = ssub.s32 %s31, %s38
      %s44 = ssub.s32 %s30, %s42
      %s45 = sor.u32 %s43, %s44
      %p46 = scmp.eq.s32.totalorder %s45, 0
      %s48 = sadd.s32 %s47, 1
      %s49 = scalar_select %p46, %s47, %s48
      %p52 = pneg %p46
      %p53 = scmp.eq.s32.totalorder %s23, 3
      %p54 = por %p52, %p53
      %p55 = scmp.ne.s32.totalorder %s47, %s50
      %p56 = scmp.eq.s32.totalorder %s23, 0
      %p57 = por %p55, %p56
      %p58 = scmp.ne.s32.totalorder %s47, %s50
      %p59 = scmp.eq.s32.totalorder %s28, 3
      %p60 = por %p58, %p59
      %p61 = scmp.ne.s32.totalorder %s50, %s51
      %p62 = scmp.eq.s32.totalorder %s28, 0
      %p63 = por %p61, %p62
      %p64 = scmp.ne.s32.totalorder %s50, %s51
      %p65 = scmp.eq.s32.totalorder %s29, 3
      %p66 = por %p64, %p65
      %p68 = scmp.ne.s32.totalorder %s51, %s67
      %p69 = scmp.eq.s32.totalorder %s29, 0
      %p70 = por %p68, %p69
      %s71 = ssub.s32 %s31, %s38
      %s72 = ssub.s32 %s30, %s42
      %s73 = sor.u32 %s71, %s72
      %p74 = scmp.eq.s32.totalorder %s73, 0
      %s76 = sadd.s32 %s75, 1
      %s77 = scalar_select %p74, %s75, %s76
      %p80 = pneg %p74
      %p81 = scmp.eq.s32.totalorder %s23, 3
      %p82 = por %p80, %p81
      %p83 = scmp.ne.s32.totalorder %s75, %s78
      %p84 = scmp.eq.s32.totalorder %s23, 0
      %p85 = por %p83, %p84
      %p86 = scmp.ne.s32.totalorder %s75, %s78
      %p87 = scmp.eq.s32.totalorder %s28, 3
      %p88 = por %p86, %p87
      %p89 = scmp.ne.s32.totalorder %s78, %s79
      %p90 = scmp.eq.s32.totalorder %s28, 0
      %p91 = por %p89, %p90
      %p92 = scmp.ne.s32.totalorder %s78, %s79
      %p93 = scmp.eq.s32.totalorder %s29, 3
      %p94 = por %p92, %p93
      %p96 = scmp.ne.s32.totalorder %s79, %s95
      %p97 = scmp.eq.s32.totalorder %s29, 0
      %p98 = por %p96, %p97
      %s100 = sadd.s32 %s99, 1
      %p103 = scmp.eq.s32.totalorder %s23, 3
      %p104 = scmp.ne.s32.totalorder %s99, %s101
      %p105 = scmp.eq.s32.totalorder %s23, 0
      %p106 = por %p104, %p105
      %p107 = scmp.ne.s32.totalorder %s99, %s101
      %p108 = scmp.eq.s32.totalorder %s28, 3
      %p109 = por %p107, %p108
      %p110 = scmp.ne.s32.totalorder %s101, %s102
      %p111 = scmp.eq.s32.totalorder %s28, 0
      %p112 = por %p110, %p111
      %p113 = scmp.ne.s32.totalorder %s101, %s102
      %p114 = scmp.eq.s32.totalorder %s29, 3
      %p115 = por %p113, %p114
      %p117 = scmp.ne.s32.totalorder %s102, %s116
      %p118 = scmp.eq.s32.totalorder %s29, 0
      %p119 = por %p117, %p118
      %s120 = ssub.s32 %s31, %s38
      %s121 = ssub.s32 %s30, %s42
      %s122 = sor.u32 %s120, %s121
      %p123 = scmp.eq.s32.totalorder %s122, 0
      %s125 = sadd.s32 %s124, 1
      %s126 = scalar_select %p123, %s124, %s125
      %p129 = pneg %p123
      %p130 = scmp.eq.s32.totalorder %s23, 3
      %p131 = por %p129, %p130
      %p132 = scmp.ne.s32.totalorder %s124, %s127
      %p133 = scmp.eq.s32.totalorder %s23, 0
      %p134 = por %p132, %p133
      %p135 = scmp.ne.s32.totalorder %s124, %s127
      %p136 = scmp.eq.s32.totalorder %s28, 3
      %p137 = por %p135, %p136
      %p138 = scmp.ne.s32.totalorder %s127, %s128
      %p139 = scmp.eq.s32.totalorder %s28, 0
      %p140 = por %p138, %p139
      %p141 = scmp.ne.s32.totalorder %s127, %s128
      %p142 = scmp.eq.s32.totalorder %s29, 3
      %p143 = por %p141, %p142
      %p145 = scmp.ne.s32.totalorder %s128, %s144
      %p146 = scmp.eq.s32.totalorder %s29, 0
      %p147 = por %p145, %p146
      %s148 = ssub.s32 %s31, %s38
      %s149 = ssub.s32 %s30, %s42
      %s150 = sor.u32 %s148, %s149
      %p151 = scmp.eq.s32.totalorder %s150, 0
      %s153 = sadd.s32 %s152, 1
      %s154 = scalar_select %p151, %s152, %s153
      %p157 = pneg %p151
      %p158 = scmp.eq.s32.totalorder %s23, 3
      %p159 = por %p157, %p158
      %p160 = scmp.ne.s32.totalorder %s152, %s155
      %p161 = scmp.eq.s32.totalorder %s23, 0
      %p162 = por %p160, %p161
      %p163 = scmp.ne.s32.totalorder %s152, %s155
      %p164 = scmp.eq.s32.totalorder %s28, 3
      %p165 = por %p163, %p164
      %p166 = scmp.ne.s32.totalorder %s155, %s156
      %p167 = scmp.eq.s32.totalorder %s28, 0
      %p168 = por %p166, %p167
      %p169 = scmp.ne.s32.totalorder %s155, %s156
      %p170 = scmp.eq.s32.totalorder %s29, 3
      %p171 = por %p169, %p170
      %p173 = scmp.ne.s32.totalorder %s156, %s172
      %p174 = scmp.eq.s32.totalorder %s29, 0
      %p175 = por %p173, %p174
      %p176 = scmp.le.s32.totalorder 1, %s23
      %p177 = scmp.lt.s32.totalorder %s23, 5
      %p178 = pnand %p176, %p177
      %p179 = pneg %p178
      // Predicated region
      $region9: #{tpu_custom_call.1} parent=5 // pred_check
        _
      $region10: #{tpu_custom_call.1} parent=5 // pred_check_branch
        %181 = sbr.rel (%p178) target = $region12
      $region11: #{tpu_custom_call.1} parent=5 // pred_region
        %s182 = ssub.s32 %s23, 1
        // Predicated region
        $region13: #{tpu_custom_call.1} parent=11 // pred_check
          %p183 = pneg %p112
        $region14: #{tpu_custom_call.1} parent=11 // pred_check_branch
          %185 = sbr.rel (%p183) target = $region16
        $region15: #{tpu_custom_call.1} parent=11 // pred_region
          %s187 = ssub.s32 512, 512
          %188 = vsyncadd [#allocation6], %s187
          %s189 = sshll.u32 [#allocation7], 4
          %s190 = int_to_ptr.vmem [resolvable:$true] %s189
          %195 = dma.hbm_to_vmem [thread:$0]  %s2, 512, %s190, [#allocation6], 128, 128, 8
        $region16: #{tpu_custom_call.1} parent=11 // pred_fallthru
          _
      $region12: #{tpu_custom_call.1} parent=5 // pred_fallthru
        _
      %p196 = scmp.lt.s32.totalorder %s23, 4
      // Predicated region
      $region17: #{tpu_custom_call.1} parent=5 // pred_check
        %p197 = pneg %p196
      $region18: #{tpu_custom_call.1} parent=5 // pred_check_branch
        %199 = sbr.rel (%p197) target = $region20
      $region19: #{tpu_custom_call.1} parent=5 // pred_region
        // Predicated region
        $region21: #{tpu_custom_call.1} parent=19 // pred_check
          %p200 = pneg %p57
        $region22: #{tpu_custom_call.1} parent=19 // pred_check_branch
          %202 = sbr.rel (%p200) target = $region24
        $region23: #{tpu_custom_call.1} parent=19 // pred_region
          %s203 = sand.u32 %s47, 1
          %s204 = scalar_lea.sflag [#allocation3], %s203
          %s205 = sand.u32 %s47, 1
          %s206 = smul.addr %s205, 32
          %s207 = scalar_lea.vmem [#allocation2], %s206
          %s209 = ssub.s32 512, 512
          %210 = vsyncadd %s204, %s209
          %s211 = smul.addr %s31, 8
          %s212 = sadd.s32 %s30, %s211
          %s213 = smul.addr %s212, 128
          %s214 = scalar_lea.hbm %s0, %s213
          %s215 = sshll.u32 %s207, 4
          %s216 = int_to_ptr.vmem [resolvable:$true] %s215
          %221 = dma.hbm_to_vmem [thread:$0]  %s214, 512, %s216, %s204, 256, 128, 8
        $region24: #{tpu_custom_call.1} parent=19 // pred_fallthru
          _
        // Predicated region
        $region25: #{tpu_custom_call.1} parent=19 // pred_check
          %p222 = pneg %p85
        $region26: #{tpu_custom_call.1} parent=19 // pred_check_branch
          %224 = sbr.rel (%p222) target = $region28
        $region27: #{tpu_custom_call.1} parent=19 // pred_region
          %s225 = sand.u32 %s23, 1
          %s226 = scalar_lea.sflag [#allocation6], %s225
          %s227 = sand.u32 %s75, 1
          %s228 = smul.addr %s227, 32
          %s229 = scalar_lea.vmem [#allocation5], %s228
          %s231 = ssub.s32 512, 512
          %232 = vsyncadd %s226, %s231
          %s233 = smul.addr %s31, 8
          %s234 = sadd.s32 %s30, %s233
          %s235 = smul.addr %s234, 128
          %s236 = scalar_lea.hbm %s1, %s235
          %s237 = sshll.u32 %s229, 4
          %s238 = int_to_ptr.vmem [resolvable:$true] %s237
          %243 = dma.hbm_to_vmem [thread:$0]  %s236, 512, %s238, %s226, 256, 128, 8
        $region28: #{tpu_custom_call.1} parent=19 // pred_fallthru
          _
      $region20: #{tpu_custom_call.1} parent=5 // pred_fallthru
        _
      %p244 = scmp.le.s32.totalorder 1, %s23
      %p245 = scmp.lt.s32.totalorder %s23, 5
      %p246 = pnand %p244, %p245
      %p247 = pneg %p246
      // Predicated region
      $region29: #{tpu_custom_call.1} parent=5 // pred_check
        _
      $region30: #{tpu_custom_call.1} parent=5 // pred_check_branch
        %249 = sbr.rel (%p246) target = $region32
      $region31: #{tpu_custom_call.1} parent=5 // pred_region
        %s250 = ssub.s32 %s23, 1
        %s251 = sand.u32 %s50, 1
        %s252 = scalar_lea.sflag [#allocation3], %s251
        %s253 = sand.u32 %s50, 1
        %s254 = smul.addr %s253, 32
        %s255 = scalar_lea.vmem [#allocation2], %s254
        // Predicated region
        $region33: #{tpu_custom_call.1} parent=31 // pred_check
          %p256 = pneg %p63
        $region34: #{tpu_custom_call.1} parent=31 // pred_check_branch
          %258 = sbr.rel (%p256) target = $region36
        $region35: #{tpu_custom_call.1} parent=31 // pred_region
          %259 = dma.done %s252, 512
        $region36: #{tpu_custom_call.1} parent=31 // pred_fallthru
          _
        %s260 = sand.u32 %s28, 1
        %s261 = scalar_lea.sflag [#allocation6], %s260
        %s262 = sand.u32 %s78, 1
        %s263 = smul.addr %s262, 32
        %s264 = scalar_lea.vmem [#allocation5], %s263
        // Predicated region
        $region37: #{tpu_custom_call.1} parent=31 // pred_check
          %p265 = pneg %p91
        $region38: #{tpu_custom_call.1} parent=31 // pred_check_branch
          %267 = sbr.rel (%p265) target = $region40
        $region39: #{tpu_custom_call.1} parent=31 // pred_region
          %268 = dma.done %s261, 512
        $region40: #{tpu_custom_call.1} parent=31 // pred_fallthru
          _
        // Predicated region
        $region41: #{tpu_custom_call.1} parent=31 // pred_check
          %p269 = pneg %p112
        $region42: #{tpu_custom_call.1} parent=31 // pred_check_branch
          %271 = sbr.rel (%p269) target = $region44
        $region43: #{tpu_custom_call.1} parent=31 // pred_region
          %272 = dma.done [#allocation6], 512
        $region44: #{tpu_custom_call.1} parent=31 // pred_fallthru
          _
        %s273 = sand.u32 %s50, 1
        %s274 = scalar_lea.sflag [#allocation3], %s273
        %s275 = sand.u32 %s50, 1
        %s276 = smul.addr %s275, 32
        %s277 = scalar_lea.vmem [#allocation2], %s276
        %p278 = pneg %p63
        %p279 = pneg %p60
        %s280 = sand.u32 %s28, 1
        %s281 = scalar_lea.sflag [#allocation6], %s280
        %s282 = sand.u32 %s78, 1
        %s283 = smul.addr %s282, 32
        %s284 = scalar_lea.vmem [#allocation5], %s283
        %p285 = pneg %p91
        %p286 = pneg %p88
        %p287 = pneg %p112
        %p288 = pneg %p109
        %p289 = pneg %p140
        %p290 = pneg %p137
        %s291 = sand.u32 %s127, 1
        %s292 = scalar_lea.sflag [#allocation4], %s291
        %s293 = sand.u32 %s127, 1
        %s294 = smul.addr %s293, 32
        %s295 = scalar_lea.vmem [#allocation8], %s294
        %p296 = pneg %p168
        %p297 = pneg %p165
        %s298 = sand.u32 %s155, 1
        %s299 = scalar_lea.sflag [#allocation10], %s298
        %s300 = sand.u32 %s155, 1
        %s301 = smul.addr %s300, 32
        %s302 = scalar_lea.vmem [#allocation9], %s301
        %v303 = vld [vmem:[#allocation7] sm:$0xff]
        %v304 = vld [vmem:[#allocation7 + $0x8] sm:$0xff]
        %v305 = vld [vmem:[#allocation7 + $0x10] sm:$0xff]
        %v306 = vld [vmem:[#allocation7 + $0x18] sm:$0xff]
        %v307 = vld [vmem:[%s255] sm:$0xff]
        %v308 = vld [vmem:[%s255 + $0x8] sm:$0xff]
        %v309 = vld [vmem:[%s255 + $0x10] sm:$0xff]
        %v310 = vld [vmem:[%s255 + $0x18] sm:$0xff]
        %v311 = vadd.f32 %v307, %v303
        %v312 = vadd.f32 %v308, %v304
        %v313 = vadd.f32 %v309, %v305
        %v314 = vadd.f32 %v310, %v306
        %315 = vst [vmem:[%s295] sm:$0xff] %v311
        %316 = vst [vmem:[%s295 + $0x8] sm:$0xff] %v312
        %317 = vst [vmem:[%s295 + $0x10] sm:$0xff] %v313
        %318 = vst [vmem:[%s295 + $0x18] sm:$0xff] %v314
        %v319 = vld [vmem:[%s264] sm:$0xff]
        %v320 = vld [vmem:[%s264 + $0x8] sm:$0xff]
        %v321 = vld [vmem:[%s264 + $0x10] sm:$0xff]
        %v322 = vld [vmem:[%s264 + $0x18] sm:$0xff]
        %v323 = vadd.f32 %v319, %v303
        %v324 = vadd.f32 %v320, %v304
        %v325 = vadd.f32 %v321, %v305
        %v326 = vadd.f32 %v322, %v306
        %327 = vst [vmem:[%s302] sm:$0xff] %v323
        %328 = vst [vmem:[%s302 + $0x8] sm:$0xff] %v324
        %329 = vst [vmem:[%s302 + $0x10] sm:$0xff] %v325
        %330 = vst [vmem:[%s302 + $0x18] sm:$0xff] %v326
        %s331 = sand.u32 %s127, 1
        %s332 = scalar_lea.sflag [#allocation4], %s331
        %s333 = sand.u32 %s127, 1
        %s334 = smul.addr %s333, 32
        %s335 = scalar_lea.vmem [#allocation8], %s334
        %s336 = sand.u32 %s155, 1
        %s337 = scalar_lea.sflag [#allocation10], %s336
        %s338 = sand.u32 %s155, 1
        %s339 = smul.addr %s338, 32
        %s340 = scalar_lea.vmem [#allocation9], %s339
        // Predicated region
        $region45: #{tpu_custom_call.1} parent=31 // pred_check
          %p341 = pneg %p137
        $region46: #{tpu_custom_call.1} parent=31 // pred_check_branch
          %343 = sbr.rel (%p341) target = $region48
        $region47: #{tpu_custom_call.1} parent=31 // pred_region
          %s345 = ssub.s32 512, 512
          %346 = vsyncadd %s332, %s345
          %s347 = smul.addr %s33, 8
          %s348 = sadd.s32 %s32, %s347
          %s349 = smul.addr %s348, 128
          %s350 = scalar_lea.hbm %s3, %s349
          %s351 = sshll.u32 %s335, 4
          %s352 = int_to_ptr.vmem [resolvable:$true] %s351
          %357 = dma.vmem_to_hbm [thread:$0]  %s352, 512, %s350, %s332, 128, 256, 8
        $region48: #{tpu_custom_call.1} parent=31 // pred_fallthru
          _
        // Predicated region
        $region49: #{tpu_custom_call.1} parent=31 // pred_check
          %p358 = pneg %p165
        $region50: #{tpu_custom_call.1} parent=31 // pred_check_branch
          %360 = sbr.rel (%p358) target = $region52
        $region51: #{tpu_custom_call.1} parent=31 // pred_region
          %s362 = ssub.s32 512, 512
          %363 = vsyncadd %s337, %s362
          %s364 = smul.addr %s33, 8
          %s365 = sadd.s32 %s32, %s364
          %s366 = smul.addr %s365, 128
          %s367 = scalar_lea.hbm %s4, %s366
          %s368 = sshll.u32 %s340, 4
          %s369 = int_to_ptr.vmem [resolvable:$true] %s368
          %374 = dma.vmem_to_hbm [thread:$0]  %s369, 512, %s367, %s337, 128, 256, 8
        $region52: #{tpu_custom_call.1} parent=31 // pred_fallthru
          _
      $region32: #{tpu_custom_call.1} parent=5 // pred_fallthru
        _
      %p375 = scmp.le.s32.totalorder 2, %s23
      // Predicated region
      $region53: #{tpu_custom_call.1} parent=5 // pred_check
        %p376 = pneg %p375
      $region54: #{tpu_custom_call.1} parent=5 // pred_check_branch
        %378 = sbr.rel (%p376) target = $region56
      $region55: #{tpu_custom_call.1} parent=5 // pred_region
        %s379 = ssub.s32 %s23, 2
        // Predicated region
        $region57: #{tpu_custom_call.1} parent=55 // pred_check
          %p380 = pneg %p143
        $region58: #{tpu_custom_call.1} parent=55 // pred_check_branch
          %382 = sbr.rel (%p380) target = $region60
        $region59: #{tpu_custom_call.1} parent=55 // pred_region
          %s383 = sand.u32 %s128, 1
          %s384 = scalar_lea.sflag [#allocation4], %s383
          %s385 = sand.u32 %s128, 1
          %s386 = smul.addr %s385, 32
          %s387 = scalar_lea.vmem [#allocation8], %s386
          %388 = dma.done %s384, 512
        $region60: #{tpu_custom_call.1} parent=55 // pred_fallthru
          _
        // Predicated region
        $region61: #{tpu_custom_call.1} parent=55 // pred_check
          %p389 = pneg %p171
        $region62: #{tpu_custom_call.1} parent=55 // pred_check_branch
          %391 = sbr.rel (%p389) target = $region64
        $region63: #{tpu_custom_call.1} parent=55 // pred_region
          %s392 = sand.u32 %s156, 1
          %s393 = scalar_lea.sflag [#allocation10], %s392
          %s394 = sand.u32 %s156, 1
          %s395 = smul.addr %s394, 32
          %s396 = scalar_lea.vmem [#allocation9], %s395
          %397 = dma.done %s393, 512
        $region64: #{tpu_custom_call.1} parent=55 // pred_fallthru
          _
      $region56: #{tpu_custom_call.1} parent=5 // pred_fallthru
        _
    $region6: #{tpu_custom_call.1} parent=1 // loop_footer
      %s27 = sadd.s32 1, %s23
    $region7: #{tpu_custom_call.1} parent=1 // loop_footer_branch
      %22 = sbr.rel target = $region3
    $region8: #{tpu_custom_call.1} parent=1 // loop_exit
      _
    %398 = vsyncpa [#allocation3], 1
    %s399 = scalar_lea.sflag [#allocation3], 1
    %400 = vsyncpa %s399, 1
    %401 = vsyncpa [#allocation6], 1
    %s402 = scalar_lea.sflag [#allocation6], 1
    %403 = vsyncpa %s402, 1
    %404 = vsyncpa [#allocation4], 1
    %s405 = scalar_lea.sflag [#allocation4], 1
    %406 = vsyncpa %s405, 1
    %407 = vsyncpa [#allocation10], 1
    %s408 = scalar_lea.sflag [#allocation10], 1
    %409 = vsyncpa %s408, 1

</llo_original>
